<compile_context>
chip_gen: v5e
topology: v5e:2x2
jax: 0.10.0
libtpu: 0.0.40
codegen_flags: <defaults>
</compile_context>

<pallas_src>
import functools

import jax
import jax.numpy as jnp
import numpy as np
from jax.experimental import pallas as pl
from jax.experimental.pallas import tpu as pltpu

H = 768  # hidden size fixed by the module (Linear(768, 768))


def _head_kernel(*refs, num_labels, batch, tile_rows, train):
    """Fused (l1 @ classifier) head + per-example cross-entropy, one row tile.

    Refs (train=False): x[tb,H], w_fused[H,LP], b_fused[1,LP], labels[tb,1], out[tb,LP]
    Refs (train=True):  ... + mask[tb,H] (values 0 or 1/(1-p)) before out.
    out columns [0, num_labels) = logits; column num_labels = per-example CE.
    """
    if train:
        x_ref, wf_ref, bf_ref, labels_ref, mask_ref, out_ref = refs
    else:
        x_ref, wf_ref, bf_ref, labels_ref, out_ref = refs

    x = x_ref[...]
    if train:
        x = x * mask_ref[...]          # mask already carries the 1/(1-p) scale

    # Fused l1+classifier: one [tb, H] @ [H, LP] matmul, f32 accumulation.
    logits = jnp.dot(x, wf_ref[...],
                     preferred_element_type=jnp.float32) + bf_ref[...]

    # Per-example cross-entropy on the lane-padded width with a column mask.
    tb, lp = logits.shape
    col = jax.lax.broadcasted_iota(jnp.int32, (tb, lp), 1)
    col_valid = col < num_labels
    masked = jnp.where(col_valid, logits, jnp.float32(-1e30))
    m = jnp.max(masked, axis=-1, keepdims=True)
    z = jnp.exp(masked - m)                                   # padded cols -> 0
    lse = jnp.log(jnp.sum(z, axis=-1, keepdims=True)) + m     # [tb, 1]

    lbl = labels_ref[...]                                     # [tb, 1] int32
    picked = jnp.sum(jnp.where(col == lbl, logits, 0.0), axis=-1, keepdims=True)
    per_ex = lse - picked                                     # [tb, 1]

    row = (jax.lax.broadcasted_iota(jnp.int32, (tb, 1), 0)
           + pl.program_id(0) * tile_rows)
    per_ex = jnp.where(row < batch, per_ex, 0.0)              # zero padded rows

    # Single lane-dense store: logits, with per-example CE stashed in the
    # spare padded lane `num_labels` (LP always reserves at least one).
    out_ref[...] = jnp.where(col == num_labels, per_ex, logits)


def prepare_params(w1, b1, wc, bc, *, compute_dtype=jnp.bfloat16):
    """One-time parameter prep (outside the hot path).

    Torch layouts in: w1 [768,768], b1 [768], wc [num_labels,768], bc [num_labels].
    Returns the FUSED head weight/bias:
      W_fused = w1.T @ wc_padded.T   [768, LP]   (compute_dtype)
      b_fused = b1 @ wc_padded.T + bc  [1, LP]   (f32)
    LP is lane-padded to a multiple of 128 with >=1 spare lane for the CE stash.
    """
    num_labels = wc.shape[0]
    lp = ((num_labels + 1 + 127) // 128) * 128       # +1 spare lane for CE
    w1t = jnp.asarray(w1, jnp.float32).T                                 # [768,768]
    wct = jnp.zeros((H, lp), jnp.float32).at[:, :num_labels].set(
        jnp.asarray(wc, jnp.float32).T)                                  # [768,LP]
    bcp = jnp.zeros((lp,), jnp.float32).at[:num_labels].set(
        jnp.asarray(bc, jnp.float32))
    w_fused = (w1t @ wct).astype(compute_dtype)                          # [768,LP]
    b_fused = (jnp.asarray(b1, jnp.float32) @ wct + bcp).reshape(1, lp)  # f32
    return w_fused, b_fused, num_labels, lp, compute_dtype


def make_dropout_mask(rng, batch, p_drop, dtype=jnp.float32):
    """Host-side dropout mask for the CLS rows, pre-scaled by 1/(1-p)."""
    keep = jax.random.bernoulli(rng, 1.0 - p_drop, (batch, H))
    return keep.astype(dtype) * (1.0 / (1.0 - p_drop))


def _pick_row_tile(batch):
    if batch <= 128:
        return batch                     # single tile, no padding needed
    kind = ""
    try:
        kind = jax.devices()[0].device_kind.lower()
    except Exception:
        pass
    if "v7" in kind:
        return 128                       # >=2 parallel steps -> both TCs busy
    return 256 if batch >= 256 else 128  # single-TC: amortize per-step overhead


def classifier_head(hidden, params, labels, *, train=False, dropout_mask=None,
                    row_tile=None):
    """hidden: [B, S, 768] (stand-in for outputs[0]); labels: [B] int."""
    w_fused, b_fused, num_labels, lp, compute_dtype = params
    B, S, h = hidden.shape
    assert h == H

    # CLS-first: only out[:, 0, :] is consumed downstream, so slice before the
    # matmul — B rows (not B*S) ever reach VMEM / the MXU.
    cls = hidden[:, 0, :].astype(compute_dtype)                 # [B, H]

    tb = row_tile if row_tile is not None else _pick_row_tile(B)
    bp = ((B + tb - 1) // tb) * tb
    n_tiles = bp // tb

    if bp != B:
        cls = jnp.pad(cls, ((0, bp - B), (0, 0)))
    labels_2d = labels.astype(jnp.int32).reshape(B, 1)
    if bp != B:
        labels_2d = jnp.pad(labels_2d, ((0, bp - B), (0, 0)))

    args = [cls, w_fused, b_fused, labels_2d]
    in_specs = [
        pl.BlockSpec((tb, H), lambda i: (i, 0)),    # CLS rows (row-tiled)
        pl.BlockSpec((H, lp), lambda i: (0, 0)),    # fused weight (constant)
        pl.BlockSpec((1, lp), lambda i: (0, 0)),    # fused bias (constant)
        pl.BlockSpec((tb, 1), lambda i: (i, 0)),    # labels (row-tiled)
    ]
    if train:
        if dropout_mask is None:
            raise ValueError("train=True requires a host-generated dropout_mask")
        mask = dropout_mask.astype(compute_dtype)
        if bp != B:
            mask = jnp.pad(mask, ((0, bp - B), (0, 0)))
        args.append(mask)
        in_specs.append(pl.BlockSpec((tb, H), lambda i: (i, 0)))

    isz = jnp.dtype(compute_dtype).itemsize
    cost = pl.CostEstimate(
        flops=2 * bp * H * lp + 8 * bp * lp,
        transcendentals=bp * lp + bp,
        bytes_accessed=(bp * H * isz * (2 if train else 1)     # acts (+ mask)
                        + H * lp * isz + lp * 4                # fused W, b
                        + bp * 4                               # labels
                        + bp * lp * 4),                        # output
    )

    kernel = functools.partial(_head_kernel, num_labels=num_labels, batch=B,
                               tile_rows=tb, train=train)

    out = pl.pallas_call(
        kernel,
        grid=(n_tiles,),
        in_specs=in_specs,
        out_specs=pl.BlockSpec((tb, lp), lambda i: (i, 0)),   # lane-dense block
        out_shape=jax.ShapeDtypeStruct((bp, lp), jnp.float32),
        compiler_params=pltpu.CompilerParams(
            dimension_semantics=("parallel",)),
        cost_estimate=cost,
    )(*args)

    logits = out[:B, :num_labels]
    # Spare lane `num_labels` holds per-example CE (0 for padded rows).
    loss = jnp.sum(out[:, num_labels]) / B           # mean reduction
    return logits, loss


def _reference(hidden, w1, b1, wc, bc, labels, cls_mask=None):
    """Pure-JAX reference with the original torch op order (full sequence)."""
    B, S, _ = hidden.shape
    seq = hidden
    if cls_mask is not None:
        # torch dropout hits every token, but only the CLS row reaches logits.
        seq = seq.at[:, 0, :].multiply(cls_mask)
    out = seq.reshape(B * S, H) @ w1.T + b1
    cls = out.reshape(B, S, H)[:, 0, :]
    logits = cls @ wc.T + bc
    lse = jax.scipy.special.logsumexp(logits, axis=-1)
    picked = jnp.take_along_axis(logits, labels[:, None], axis=-1)[:, 0]
    loss = jnp.mean(lse - picked)
    return logits, loss


if __name__ == "__main__":
    B, S, num_labels = 2, 8, 4
    p_drop = 0.2

    key = jax.random.PRNGKey(0)
    k_h, k_w1, k_b1, k_wc, k_bc, k_lbl, k_drop = jax.random.split(key, 7)

    # Synthetic stand-in for the backbone's sequence output outputs[0].
    hidden = jax.random.normal(k_h, (B, S, H), dtype=jnp.float32)

    # Head parameters in torch nn.Linear layout: [out_features, in_features].
    bound1 = 1.0 / np.sqrt(H)
    w1 = jax.random.uniform(k_w1, (H, H), jnp.float32, -bound1, bound1)
    b1 = jax.random.uniform(k_b1, (H,), jnp.float32, -bound1, bound1)
    wc = jax.random.uniform(k_wc, (num_labels, H), jnp.float32, -bound1, bound1)
    bc = jax.random.uniform(k_bc, (num_labels,), jnp.float32, -bound1, bound1)
    labels = jax.random.randint(k_lbl, (B,), 0, num_labels, dtype=jnp.int32)

    ref_logits, ref_loss = _reference(hidden, w1, b1, wc, bc, labels)

    # --- f32 path: exact check of the fused-head algebra (eval mode) --------
    params_f32 = prepare_params(w1, b1, wc, bc, compute_dtype=jnp.float32)
    logits, loss = classifier_head(hidden, params_f32, labels, train=False)
    jax.block_until_ready((logits, loss))
    np.testing.assert_allclose(np.asarray(logits), np.asarray(ref_logits),
                               rtol=1e-4, atol=1e-4)
    np.testing.assert_allclose(float(loss), float(ref_loss), rtol=1e-4, atol=1e-4)

    # --- f32 path, train mode: deterministic host-generated dropout mask ----
    mask = make_dropout_mask(k_drop, B, p_drop)
    logits_tr, loss_tr = classifier_head(hidden, params_f32, labels,
                                         train=True, dropout_mask=mask)
    jax.block_until_ready((logits_tr, loss_tr))
    ref_logits_tr, ref_loss_tr = _reference(hidden, w1, b1, wc, bc, labels,
                                            cls_mask=mask)
    np.testing.assert_allclose(np.asarray(logits_tr), np.asarray(ref_logits_tr),
                               rtol=1e-4, atol=1e-4)
    np.testing.assert_allclose(float(loss_tr), float(ref_loss_tr),
                               rtol=1e-4, atol=1e-4)

    # --- bf16 MXU path (production config): looser tolerance ----------------
    params_bf16 = prepare_params(w1, b1, wc, bc, compute_dtype=jnp.bfloat16)
    logits_bf, loss_bf = classifier_head(hidden, params_bf16, labels, train=False)
    jax.block_until_ready((logits_bf, loss_bf))
    np.testing.assert_allclose(np.asarray(logits_bf), np.asarray(ref_logits),
                               rtol=2e-2, atol=2e-2)
    np.testing.assert_allclose(float(loss_bf), float(ref_loss),
                               rtol=2e-2, atol=2e-2)

    logits_bft, loss_bft = classifier_head(hidden, params_bf16, labels,
                                           train=True, dropout_mask=mask)
    jax.block_until_ready((logits_bft, loss_bft))
    assert bool(jnp.all(jnp.isfinite(logits_bft))), "bf16 train logits not finite"
    np.testing.assert_allclose(float(loss_bft), float(ref_loss_tr),
                               rtol=3e-2, atol=3e-2)

    print("KERNEL_OK")
</pallas_src>

<mosaic_0001>
module attributes {stable_mosaic.version = 11 : i64} {
  func.func @_head_kernel(%arg0: i32, %arg1: memref<2x768xf32, #tpu.memory_space<vmem>>, %arg2: memref<768x128xf32, #tpu.memory_space<vmem>>, %arg3: memref<1x128xf32, #tpu.memory_space<vmem>>, %arg4: memref<2x1xi32, #tpu.memory_space<vmem>>, %arg5: memref<2x128xf32, #tpu.memory_space<vmem>>) attributes {dimension_semantics = [#tpu.dimension_semantics<parallel>], iteration_bounds = array<i64: 1>, scalar_prefetch = 0 : i64, scratch_operands = 0 : i64, tpu.core_type = #tpu.core_type<tc>, window_params = [{transform_indices = @transform_0, window_bounds = array<i64: 2, 768>}, {pipeline_mode = #tpu.pipeline_mode<synchronous>, transform_indices = @transform_1, window_bounds = array<i64: 768, 128>}, {pipeline_mode = #tpu.pipeline_mode<synchronous>, transform_indices = @transform_2, window_bounds = array<i64: 1, 128>}, {transform_indices = @transform_3, window_bounds = array<i64: 2, 1>}, {transform_indices = @transform_4, window_bounds = array<i64: 2, 128>}]} {
    %c0 = arith.constant 0 : index
    %c0_0 = arith.constant 0 : index
    %0 = vector.load %arg1[%c0, %c0_0] : memref<2x768xf32, #tpu.memory_space<vmem>>, vector<2x768xf32>
    %c0_1 = arith.constant 0 : index
    %c0_2 = arith.constant 0 : index
    %1 = vector.load %arg2[%c0_1, %c0_2] : memref<768x128xf32, #tpu.memory_space<vmem>>, vector<768x128xf32>
    %cst = arith.constant dense<0.000000e+00> : vector<2x128xf32>
    %2 = tpu.matmul %0, %1, %cst {dimension_numbers = #tpu.dot_dimension_numbers<[1], [0], [0], [1], [0, 0, 1, 1], [], []>} : vector<2x768xf32>, vector<768x128xf32>, vector<2x128xf32> -> vector<2x128xf32>
    %c0_3 = arith.constant 0 : index
    %c0_4 = arith.constant 0 : index
    %3 = vector.load %arg3[%c0_3, %c0_4] : memref<1x128xf32, #tpu.memory_space<vmem>>, vector<1x128xf32>
    %4 = vector.broadcast %3 : vector<1x128xf32> to vector<2x128xf32>
    %5 = arith.addf %2, %4 : vector<2x128xf32>
    %6 = tpu.iota {dimensions = array<i32: 1>} : vector<2x128xi32>
    %c4_i32 = arith.constant 4 : i32
    %7 = vector.broadcast %c4_i32 : i32 to vector<2x128xi32>
    %8 = arith.cmpi slt, %6, %7 : vector<2x128xi32>
    %cst_5 = arith.constant -1.000000e+30 : f32
    %9 = vector.broadcast %cst_5 : f32 to vector<2x128xf32>
    %10 = arith.select %8, %5, %9 : vector<2x128xi1>, vector<2x128xf32>
    %cst_6 = arith.constant dense<0xFF800000> : vector<2xf32>
    %11 = vector.multi_reduction <maximumf>, %10, %cst_6 [1] : vector<2x128xf32> to vector<2xf32>
    %12 = vector.shape_cast %11 : vector<2xf32> to vector<2x1xf32>
    %13 = vector.broadcast %12 : vector<2x1xf32> to vector<2x128xf32>
    %14 = arith.subf %10, %13 : vector<2x128xf32>
    %15 = math.exp %14 : vector<2x128xf32>
    %cst_7 = arith.constant dense<0.000000e+00> : vector<2xf32>
    %16 = vector.multi_reduction <add>, %15, %cst_7 [1] : vector<2x128xf32> to vector<2xf32>
    %17 = vector.shape_cast %16 : vector<2xf32> to vector<2x1xf32>
    %18 = math.log %17 : vector<2x1xf32>
    %19 = arith.addf %18, %12 : vector<2x1xf32>
    %c0_8 = arith.constant 0 : index
    %c0_9 = arith.constant 0 : index
    %20 = vector.load %arg4[%c0_8, %c0_9] : memref<2x1xi32, #tpu.memory_space<vmem>>, vector<2x1xi32>
    %21 = vector.broadcast %20 : vector<2x1xi32> to vector<2x128xi32>
    %22 = arith.cmpi eq, %6, %21 : vector<2x128xi32>
    %cst_10 = arith.constant 0.000000e+00 : f32
    %23 = vector.broadcast %cst_10 : f32 to vector<2x128xf32>
    %24 = arith.select %22, %5, %23 : vector<2x128xi1>, vector<2x128xf32>
    %cst_11 = arith.constant dense<0.000000e+00> : vector<2xf32>
    %25 = vector.multi_reduction <add>, %24, %cst_11 [1] : vector<2x128xf32> to vector<2xf32>
    %26 = vector.shape_cast %25 : vector<2xf32> to vector<2x1xf32>
    %27 = arith.subf %19, %26 : vector<2x1xf32>
    %28 = tpu.iota {dimensions = array<i32: 0>} : vector<2x1xi32>
    %c2_i32 = arith.constant 2 : i32
    %29 = arith.muli %arg0, %c2_i32 : i32
    %30 = vector.broadcast %29 : i32 to vector<2x1xi32>
    %31 = arith.addi %28, %30 : vector<2x1xi32>
    %c2_i32_12 = arith.constant 2 : i32
    %32 = vector.broadcast %c2_i32_12 : i32 to vector<2x1xi32>
    %33 = arith.cmpi slt, %31, %32 : vector<2x1xi32>
    %cst_13 = arith.constant 0.000000e+00 : f32
    %34 = vector.broadcast %cst_13 : f32 to vector<2x1xf32>
    %35 = arith.select %33, %27, %34 : vector<2x1xi1>, vector<2x1xf32>
    %c4_i32_14 = arith.constant 4 : i32
    %36 = vector.broadcast %c4_i32_14 : i32 to vector<2x128xi32>
    %37 = arith.cmpi eq, %6, %36 : vector<2x128xi32>
    %38 = vector.shape_cast %35 : vector<2x1xf32> to vector<2x1xf32>
    %39 = vector.broadcast %38 : vector<2x1xf32> to vector<2x128xf32>
    %40 = arith.select %37, %39, %5 : vector<2x128xi1>, vector<2x128xf32>
    %c0_15 = arith.constant 0 : index
    %c0_16 = arith.constant 0 : index
    %41 = vector.load %arg5[%c0_15, %c0_16] : memref<2x128xf32, #tpu.memory_space<vmem>>, vector<2x128xf32>
    tpu.vector_store %arg5[%c0_15, %c0_16], %40 {strides = array<i32>} : memref<2x128xf32, #tpu.memory_space<vmem>>, vector<2x128xf32>,
    return
  }
  func.func @transform_0(%arg0: i32) -> (i32, i32) {
    %c0_i32 = arith.constant 0 : i32
    %c0_i32_0 = arith.constant 0 : i32
    return %arg0, %c0_i32 : i32, i32
  }
  func.func @transform_1(%arg0: i32) -> (i32, i32) {
    %c0_i32 = arith.constant 0 : i32
    %c0_i32_0 = arith.constant 0 : i32
    %c0_i32_1 = arith.constant 0 : i32
    return %c0_i32, %c0_i32_0 : i32, i32
  }
  func.func @transform_2(%arg0: i32) -> (i32, i32) {
    %c0_i32 = arith.constant 0 : i32
    %c0_i32_0 = arith.constant 0 : i32
    %c0_i32_1 = arith.constant 0 : i32
    return %c0_i32, %c0_i32_0 : i32, i32
  }
  func.func @transform_3(%arg0: i32) -> (i32, i32) {
    %c0_i32 = arith.constant 0 : i32
    %c0_i32_0 = arith.constant 0 : i32
    return %arg0, %c0_i32 : i32, i32
  }
  func.func @transform_4(%arg0: i32) -> (i32, i32) {
    %c0_i32 = arith.constant 0 : i32
    %c0_i32_0 = arith.constant 0 : i32
    return %arg0, %c0_i32 : i32, i32
  }
}

</mosaic_0001>

<llo_original>
// kernel: tpu_custom_call.1
$region0: #{tpu_custom_call.1}
  #allocation0 [shape = 'u32[]', space=smem, size = 0x4, offset = 0x4, fixed_abs, tag = 'smem constant byte address 0x4 - core index']
  #allocation1 [shape = 'u32[72,128]{1,0:T(1,128)}', space=vmem, size = 0x9000, scoped, tag = 'internal scratch']
  %s0 = inlined_call_operand.hbm [shape: f32[2,768], index: 0, kind: input, shape index: {}]
  %s1 = inlined_call_operand.hbm [shape: f32[768,128], index: 1, kind: input, shape index: {}]
  %s2 = inlined_call_operand.vmem [shape: f32[1,128], index: 2, kind: input, shape index: {}]
  %s3 = inlined_call_operand.vmem [shape: s32[2,1], index: 3, kind: input, shape index: {}]
  %s4 = inlined_call_operand.hbm [shape: f32[2,128], index: 4, kind: output, shape index: {}]
  %s5 = sld [smem:[#allocation0]]
  $region34: #{tpu_custom_call.1} parent=0
    _
  %s7 = ssub.s32 1, %s5
  %s8 = scalar_select 0, %s7, %s5
  $region1: #{tpu_custom_call.1} parent=0
    #allocation2 [shape = 'u8[6144]{0}', space=vmem, size = 0x1800, scoped, tag = 'input window, operand 0, single buffered']
    #allocation3 [shape = 's32[1]{0}', space=sflag, size = 0x4, scoped, tag = 'scoped memory for tpu_custom_call.1']
    #allocation4 [shape = 's32[1]{0}', space=sflag, size = 0x4, scoped, tag = 'scoped memory for tpu_custom_call.1']
    #allocation5 [shape = 'u8[393216]{0}', space=vmem, size = 0x60000, scoped, tag = 'input window, operand 1, single buffered']
    #allocation6 [shape = 's32[1]{0}', space=sflag, size = 0x4, scoped, tag = 'scoped memory for tpu_custom_call.1']
    #allocation7 [shape = 'u8[1024]{0}', space=vmem, size = 0x400, scoped, tag = 'output window, operand 0, single buffered']
    %9 = vsyncpa [#allocation3], 0
    %10 = vsyncpa [#allocation6], 0
    %11 = vsyncpa [#allocation4], 0
    // Predicated region
    $region2: #{tpu_custom_call.1} parent=1 // pred_check
      _
    $region3: #{tpu_custom_call.1} parent=1 // pred_check_branch
      %13 = sbr.rel (0) target = $region5
    $region4: #{tpu_custom_call.1} parent=1 // pred_region
      %15 = vsyncadd [#allocation3], 0
      %s17 = sshll.u32 %s0, 4
      %s18 = int_to_ptr.hbm [resolvable:$true] %s17
      %s19 = sshll.u32 [#allocation2], 4
      %s20 = int_to_ptr.vmem [resolvable:$true] %s19
      %22 = dma.hbm_to_vmem [thread:$0]  %s18, 192, %s20, [#allocation3]
    $region5: #{tpu_custom_call.1} parent=1 // pred_fallthru
      _
    // Predicated region
    $region6: #{tpu_custom_call.1} parent=1 // pred_check
      _
    $region7: #{tpu_custom_call.1} parent=1 // pred_check_branch
      %24 = sbr.rel (0) target = $region9
    $region8: #{tpu_custom_call.1} parent=1 // pred_region
      %26 = vsyncadd [#allocation6], 0
      %s27 = sshll.u32 %s1, 4
      %s28 = int_to_ptr.hbm [resolvable:$true] %s27
      %s29 = sshll.u32 [#allocation5], 4
      %s30 = int_to_ptr.vmem [resolvable:$true] %s29
      %35 = dma.hbm_to_vmem [thread:$0]  %s28, 12288, %s30, [#allocation6], 128, 128, 8
    $region9: #{tpu_custom_call.1} parent=1 // pred_fallthru
      _
    // Predicated region
    $region10: #{tpu_custom_call.1} parent=1 // pred_check
      _
    $region11: #{tpu_custom_call.1} parent=1 // pred_check_branch
      %37 = sbr.rel (0) target = $region13
    $region12: #{tpu_custom_call.1} parent=1 // pred_region
      _
    $region13: #{tpu_custom_call.1} parent=1 // pred_fallthru
      _
    // Predicated region
    $region14: #{tpu_custom_call.1} parent=1 // pred_check
      _
    $region15: #{tpu_custom_call.1} parent=1 // pred_check_branch
      %39 = sbr.rel (0) target = $region17
    $region16: #{tpu_custom_call.1} parent=1 // pred_region
      _
    $region17: #{tpu_custom_call.1} parent=1 // pred_fallthru
      _
    // Predicated region
    $region18: #{tpu_custom_call.1} parent=1 // pred_check
      _
    $region19: #{tpu_custom_call.1} parent=1 // pred_check_branch
      %41 = sbr.rel (0) target = $region21
    $region20: #{tpu_custom_call.1} parent=1 // pred_region
      %43 = dma.done [#allocation3], 192
    $region21: #{tpu_custom_call.1} parent=1 // pred_fallthru
      _
    // Predicated region
    $region22: #{tpu_custom_call.1} parent=1 // pred_check
      _
    $region23: #{tpu_custom_call.1} parent=1 // pred_check_branch
      %45 = sbr.rel (0) target = $region25
    $region24: #{tpu_custom_call.1} parent=1 // pred_region
      %47 = dma.done [#allocation6], 12288
    $region25: #{tpu_custom_call.1} parent=1 // pred_fallthru
      _
    %v48 = vld [vmem:[#allocation2] sm:$0xff]
    %v49 = vld [vmem:[#allocation2 + $0x8] sm:$0xf]
    %v50 = vld [vmem:[#allocation5] sm:$0xff]
    %v51 = vld [vmem:[#allocation5 + $0x8] sm:$0xff]
    %v52 = vld [vmem:[#allocation5 + $0x10] sm:$0xff]
    %v53 = vld [vmem:[#allocation5 + $0x18] sm:$0xff]
    %v54 = vld [vmem:[#allocation5 + $0x20] sm:$0xff]
    %v55 = vld [vmem:[#allocation5 + $0x28] sm:$0xff]
    %v56 = vld [vmem:[#allocation5 + $0x30] sm:$0xff]
    %v57 = vld [vmem:[#allocation5 + $0x38] sm:$0xff]
    %v58 = vld [vmem:[#allocation5 + $0x40] sm:$0xff]
    %v59 = vld [vmem:[#allocation5 + $0x48] sm:$0xff]
    %v60 = vld [vmem:[#allocation5 + $0x50] sm:$0xff]
    %v61 = vld [vmem:[#allocation5 + $0x58] sm:$0xff]
    %v62 = vld [vmem:[#allocation5 + $0x60] sm:$0xff]
    %v63 = vld [vmem:[#allocation5 + $0x68] sm:$0xff]
    %v64 = vld [vmem:[#allocation5 + $0x70] sm:$0xff]
    %v65 = vld [vmem:[#allocation5 + $0x78] sm:$0xff]
    %v66 = vld [vmem:[#allocation5 + $0x80] sm:$0xff]
    %v67 = vld [vmem:[#allocation5 + $0x88] sm:$0xff]
    %v68 = vld [vmem:[#allocation5 + $0x90] sm:$0xff]
    %v69 = vld [vmem:[#allocation5 + $0x98] sm:$0xff]
    %v70 = vld [vmem:[#allocation5 + $0xa0] sm:$0xff]
    %v71 = vld [vmem:[#allocation5 + $0xa8] sm:$0xff]
    %v72 = vld [vmem:[#allocation5 + $0xb0] sm:$0xff]
    %v73 = vld [vmem:[#allocation5 + $0xb8] sm:$0xff]
    %v74 = vld [vmem:[#allocation5 + $0xc0] sm:$0xff]
    %v75 = vld [vmem:[#allocation5 + $0xc8] sm:$0xff]
    %v76 = vld [vmem:[#allocation5 + $0xd0] sm:$0xff]
    %v77 = vld [vmem:[#allocation5 + $0xd8] sm:$0xff]
    %v78 = vld [vmem:[#allocation5 + $0xe0] sm:$0xff]
    %v79 = vld [vmem:[#allocation5 + $0xe8] sm:$0xff]
    %v80 = vld [vmem:[#allocation5 + $0xf0] sm:$0xff]
    %v81 = vld [vmem:[#allocation5 + $0xf8] sm:$0xff]
    %v82 = vld [vmem:[#allocation5 + $0x100] sm:$0xff]
    %v83 = vld [vmem:[#allocation5 + $0x108] sm:$0xff]
    %v84 = vld [vmem:[#allocation5 + $0x110] sm:$0xff]
    %v85 = vld [vmem:[#allocation5 + $0x118] sm:$0xff]
    %v86 = vld [vmem:[#allocation5 + $0x120] sm:$0xff]
    %v87 = vld [vmem:[#allocation5 + $0x128] sm:$0xff]
    %v88 = vld [vmem:[#allocation5 + $0x130] sm:$0xff]
    %v89 = vld [vmem:[#allocation5 + $0x138] sm:$0xff]
    %v90 = vld [vmem:[#allocation5 + $0x140] sm:$0xff]
    %v91 = vld [vmem:[#allocation5 + $0x148] sm:$0xff]
    %v92 = vld [vmem:[#allocation5 + $0x150] sm:$0xff]
    %v93 = vld [vmem:[#allocation5 + $0x158] sm:$0xff]
    %v94 = vld [vmem:[#allocation5 + $0x160] sm:$0xff]
    %v95 = vld [vmem:[#allocation5 + $0x168] sm:$0xff]
    %v96 = vld [vmem:[#allocation5 + $0x170] sm:$0xff]
    %v97 = vld [vmem:[#allocation5 + $0x178] sm:$0xff]
    %v98 = vld [vmem:[#allocation5 + $0x180] sm:$0xff]
    %v99 = vld [vmem:[#allocation5 + $0x188] sm:$0xff]
    %v100 = vld [vmem:[#allocation5 + $0x190] sm:$0xff]
    %v101 = vld [vmem:[#allocation5 + $0x198] sm:$0xff]
    %v102 = vld [vmem:[#allocation5 + $0x1a0] sm:$0xff]
    %v103 = vld [vmem:[#allocation5 + $0x1a8] sm:$0xff]
    %v104 = vld [vmem:[#allocation5 + $0x1b0] sm:$0xff]
    %v105 = vld [vmem:[#allocation5 + $0x1b8] sm:$0xff]
    %v106 = vld [vmem:[#allocation5 + $0x1c0] sm:$0xff]
    %v107 = vld [vmem:[#allocation5 + $0x1c8] sm:$0xff]
    %v108 = vld [vmem:[#allocation5 + $0x1d0] sm:$0xff]
    %v109 = vld [vmem:[#allocation5 + $0x1d8] sm:$0xff]
    %v110 = vld [vmem:[#allocation5 + $0x1e0] sm:$0xff]
    %v111 = vld [vmem:[#allocation5 + $0x1e8] sm:$0xff]
    %v112 = vld [vmem:[#allocation5 + $0x1f0] sm:$0xff]
    %v113 = vld [vmem:[#allocation5 + $0x1f8] sm:$0xff]
    %v114 = vld [vmem:[#allocation5 + $0x200] sm:$0xff]
    %v115 = vld [vmem:[#allocation5 + $0x208] sm:$0xff]
    %v116 = vld [vmem:[#allocation5 + $0x210] sm:$0xff]
    %v117 = vld [vmem:[#allocation5 + $0x218] sm:$0xff]
    %v118 = vld [vmem:[#allocation5 + $0x220] sm:$0xff]
    %v119 = vld [vmem:[#allocation5 + $0x228] sm:$0xff]
    %v120 = vld [vmem:[#allocation5 + $0x230] sm:$0xff]
    %v121 = vld [vmem:[#allocation5 + $0x238] sm:$0xff]
    %v122 = vld [vmem:[#allocation5 + $0x240] sm:$0xff]
    %v123 = vld [vmem:[#allocation5 + $0x248] sm:$0xff]
    %v124 = vld [vmem:[#allocation5 + $0x250] sm:$0xff]
    %v125 = vld [vmem:[#allocation5 + $0x258] sm:$0xff]
    %v126 = vld [vmem:[#allocation5 + $0x260] sm:$0xff]
    %v127 = vld [vmem:[#allocation5 + $0x268] sm:$0xff]
    %v128 = vld [vmem:[#allocation5 + $0x270] sm:$0xff]
    %v129 = vld [vmem:[#allocation5 + $0x278] sm:$0xff]
    %v130 = vld [vmem:[#allocation5 + $0x280] sm:$0xff]
    %v131 = vld [vmem:[#allocation5 + $0x288] sm:$0xff]
    %v132 = vld [vmem:[#allocation5 + $0x290] sm:$0xff]
    %v133 = vld [vmem:[#allocation5 + $0x298] sm:$0xff]
    %v134 = vld [vmem:[#allocation5 + $0x2a0] sm:$0xff]
    %v135 = vld [vmem:[#allocation5 + $0x2a8] sm:$0xff]
    %v136 = vld [vmem:[#allocation5 + $0x2b0] sm:$0xff]
    %v137 = vld [vmem:[#allocation5 + $0x2b8] sm:$0xff]
    %v138 = vld [vmem:[#allocation5 + $0x2c0] sm:$0xff]
    %v139 = vld [vmem:[#allocation5 + $0x2c8] sm:$0xff]
    %v140 = vld [vmem:[#allocation5 + $0x2d0] sm:$0xff]
    %v141 = vld [vmem:[#allocation5 + $0x2d8] sm:$0xff]
    %v142 = vld [vmem:[#allocation5 + $0x2e0] sm:$0xff]
    %v143 = vld [vmem:[#allocation5 + $0x2e8] sm:$0xff]
    %v144 = vld [vmem:[#allocation5 + $0x2f0] sm:$0xff]
    %v145 = vld [vmem:[#allocation5 + $0x2f8] sm:$0xff]
    %v146 = vld [vmem:[%s2] sm:$0x1]
    %v148 = vperm.slane %v146, 0
    %152 = vst [vmem:[#allocation1] ss:$4 sm:$0xff] %v48
    %s153 = scalar_lea.vmem [#allocation1], 32
    %154 = vst [vmem:[%s153] ss:$4 sm:$0xff] %v49
    %v155 = vld.sshfl [vmem:[#allocation1] sm:$0xff pattern:$0x73625140]
    %v156 = vld.sshfl [vmem:[#allocation1 + $0x8] sm:$0xff pattern:$0x73625140]
    %v157 = vld.sshfl [vmem:[#allocation1 + $0x10] sm:$0xff pattern:$0x73625140]
    %v158 = vld.sshfl [vmem:[#allocation1 + $0x18] sm:$0xff pattern:$0x73625140]
    %v159 = vld.sshfl [vmem:[#allocation1 + $0x20] sm:$0xff pattern:$0x73625140]
    %v160 = vld.sshfl [vmem:[#allocation1 + $0x28] sm:$0xff pattern:$0x73625140]
    %167 = vmatpush.msra.mxu0 %v65
    %168 = vmatpush.msra.mxu0 %v64
    %169 = vmatpush.msra.mxu0 %v63
    %170 = vmatpush.msra.mxu0 %v62
    %171 = vmatpush.msra.mxu0 %v61
    %172 = vmatpush.msra.mxu0 %v60
    %173 = vmatpush.msra.mxu0 %v59
    %174 = vmatpush.msra.mxu0 %v58
    %175 = vmatpush.msra.mxu0 %v57
    %176 = vmatpush.msra.mxu0 %v56
    %177 = vmatpush.msra.mxu0 %v55
    %178 = vmatpush.msra.mxu0 %v54
    %179 = vmatpush.msra.mxu0 %v53
    %180 = vmatpush.msra.mxu0 %v52
    %181 = vmatpush.msra.mxu0 %v51
    %182 = vmatpush.msra.mxu0 %v50
    %183 = vmatmul.f32.gmra.mxu0 %v155
    %v184 = vpop.f32.mrf.mxu0
    %v185 = vadd.f32 %v148, %v184
    %186 = vdwg.mxu0
    %187 = vmatpush.msra.mxu0 %v81
    %188 = vmatpush.msra.mxu0 %v80
    %189 = vmatpush.msra.mxu0 %v79
    %190 = vmatpush.msra.mxu0 %v78
    %191 = vmatpush.msra.mxu0 %v77
    %192 = vmatpush.msra.mxu0 %v76
    %193 = vmatpush.msra.mxu0 %v75
    %194 = vmatpush.msra.mxu0 %v74
    %195 = vmatpush.msra.mxu0 %v73
    %196 = vmatpush.msra.mxu0 %v72
    %197 = vmatpush.msra.mxu0 %v71
    %198 = vmatpush.msra.mxu0 %v70
    %199 = vmatpush.msra.mxu0 %v69
    %200 = vmatpush.msra.mxu0 %v68
    %201 = vmatpush.msra.mxu0 %v67
    %202 = vmatpush.msra.mxu0 %v66
    %203 = vmatmul.f32.gmra.mxu0 %v156
    %v204 = vpop.f32.mrf.mxu0
    %v205 = vadd.f32 %v185, %v204
    %206 = vdwg.mxu0
    %207 = vmatpush.msra.mxu0 %v97
    %208 = vmatpush.msra.mxu0 %v96
    %209 = vmatpush.msra.mxu0 %v95
    %210 = vmatpush.msra.mxu0 %v94
    %211 = vmatpush.msra.mxu0 %v93
    %212 = vmatpush.msra.mxu0 %v92
    %213 = vmatpush.msra.mxu0 %v91
    %214 = vmatpush.msra.mxu0 %v90
    %215 = vmatpush.msra.mxu0 %v89
    %216 = vmatpush.msra.mxu0 %v88
    %217 = vmatpush.msra.mxu0 %v87
    %218 = vmatpush.msra.mxu0 %v86
    %219 = vmatpush.msra.mxu0 %v85
    %220 = vmatpush.msra.mxu0 %v84
    %221 = vmatpush.msra.mxu0 %v83
    %222 = vmatpush.msra.mxu0 %v82
    %223 = vmatmul.f32.gmra.mxu0 %v157
    %v224 = vpop.f32.mrf.mxu0
    %v225 = vadd.f32 %v205, %v224
    %226 = vdwg.mxu0
    %227 = vmatpush.msra.mxu0 %v113
    %228 = vmatpush.msra.mxu0 %v112
    %229 = vmatpush.msra.mxu0 %v111
    %230 = vmatpush.msra.mxu0 %v110
    %231 = vmatpush.msra.mxu0 %v109
    %232 = vmatpush.msra.mxu0 %v108
    %233 = vmatpush.msra.mxu0 %v107
    %234 = vmatpush.msra.mxu0 %v106
    %235 = vmatpush.msra.mxu0 %v105
    %236 = vmatpush.msra.mxu0 %v104
    %237 = vmatpush.msra.mxu0 %v103
    %238 = vmatpush.msra.mxu0 %v102
    %239 = vmatpush.msra.mxu0 %v101
    %240 = vmatpush.msra.mxu0 %v100
    %241 = vmatpush.msra.mxu0 %v99
    %242 = vmatpush.msra.mxu0 %v98
    %243 = vmatmul.f32.gmra.mxu0 %v158
    %v244 = vpop.f32.mrf.mxu0
    %v245 = vadd.f32 %v225, %v244
    %246 = vdwg.mxu0
    %247 = vmatpush.msra.mxu0 %v129
    %248 = vmatpush.msra.mxu0 %v128
    %249 = vmatpush.msra.mxu0 %v127
    %250 = vmatpush.msra.mxu0 %v126
    %251 = vmatpush.msra.mxu0 %v125
    %252 = vmatpush.msra.mxu0 %v124
    %253 = vmatpush.msra.mxu0 %v123
    %254 = vmatpush.msra.mxu0 %v122
    %255 = vmatpush.msra.mxu0 %v121
    %256 = vmatpush.msra.mxu0 %v120
    %257 = vmatpush.msra.mxu0 %v119
    %258 = vmatpush.msra.mxu0 %v118
    %259 = vmatpush.msra.mxu0 %v117
    %260 = vmatpush.msra.mxu0 %v116
    %261 = vmatpush.msra.mxu0 %v115
    %262 = vmatpush.msra.mxu0 %v114
    %263 = vmatmul.f32.gmra.mxu0 %v159
    %v264 = vpop.f32.mrf.mxu0
    %v265 = vadd.f32 %v245, %v264
    %266 = vdwg.mxu0
    %267 = vmatpush.msra.mxu0 %v145
    %268 = vmatpush.msra.mxu0 %v144
    %269 = vmatpush.msra.mxu0 %v143
    %270 = vmatpush.msra.mxu0 %v142
    %271 = vmatpush.msra.mxu0 %v141
    %272 = vmatpush.msra.mxu0 %v140
    %273 = vmatpush.msra.mxu0 %v139
    %274 = vmatpush.msra.mxu0 %v138
    %275 = vmatpush.msra.mxu0 %v137
    %276 = vmatpush.msra.mxu0 %v136
    %277 = vmatpush.msra.mxu0 %v135
    %278 = vmatpush.msra.mxu0 %v134
    %279 = vmatpush.msra.mxu0 %v133
    %280 = vmatpush.msra.mxu0 %v132
    %281 = vmatpush.msra.mxu0 %v131
    %282 = vmatpush.msra.mxu0 %v130
    %283 = vmatmul.f32.gmra.mxu0 %v160
    %v284 = vpop.f32.mrf.mxu0
    %v285 = vadd.f32 %v265, %v284
    %286 = vdwg.mxu0
    %v287 = vlaneseq
    %v288 = vand.u32 %v287, 127
    %vm289 = vcmp.lt.s32.totalorder %v288, 4
    %v290 = vsel %vm289, %v285, -1e+30
    %vm291 = vcmask 1041408
    %v292 = vsel %vm291, %v290, -inf
    %293 = vmax.xlane.f32.xlu0 %v292
    %v294 = vpop.xlane.xlu0 %293
    %v295 = vsub.f32 %v290, %v294
    %v296 = vmul.f32 %v295, 1.442695
    %v297 = vpow.pop %v296
    %v298 = vsel %vm291, %v297, 0.0
    %299 = vadd.xlane.f32.xlu0 %v298
    %v300 = vpop.xlane.xlu0 %299
    %v301 = vlog2.pop %v300
    %v302 = vmul.f32 %v301, 0.6931472
    %v303 = vadd.f32 %v302, %v294
    %v304 = vld [vmem:[%s3] sm:$0x3]
    %305 = vset.pattern.permute.xlu0 0
    %306 = vperm.xlu0 %305, %v304
    %v307 = vpop.permute.xlu0 %306
    %vm308 = vcmp.eq.s32.totalorder %v288, %v307
    %v309 = vsel %vm308, %v285, 0.0
    %v310 = vsel %vm291, %v309, 0.0
    %311 = vadd.xlane.f32.xlu0 %v310
    %v312 = vpop.xlane.xlu0 %311
    %v313 = vsub.f32 %v303, %v312
    %v314 = vlaneseq
    %v315 = vshrl.u32 %v314, 7
    %s316 = smul.u32 0, 2
    %v317 = vstv %s316
    %v318 = vadd.s32 %v315, %v317
    %vm319 = vcmp.lt.s32.totalorder %v318, 2
    %v320 = vsel %vm319, %v313, 0.0
    %vm321 = vcmp.eq.s32.totalorder %v288, 4
    %v322 = vsel %vm321, %v320, %v285
    %323 = vst [vmem:[#allocation7] sm:$0x3] %v322
    // Predicated region
    $region26: #{tpu_custom_call.1} parent=1 // pred_check
      _
    $region27: #{tpu_custom_call.1} parent=1 // pred_check_branch
      %325 = sbr.rel (0) target = $region29
    $region28: #{tpu_custom_call.1} parent=1 // pred_region
      %327 = vsyncadd [#allocation4], 0
      %s329 = sshll.u32 [#allocation7], 4
      %s330 = int_to_ptr.vmem [resolvable:$true] %s329
      %s331 = sshll.u32 %s4, 4
      %s332 = int_to_ptr.hbm [resolvable:$true] %s331
      %334 = dma.vmem_to_hbm [thread:$0]  %s330, 32, %s332, [#allocation4]
    $region29: #{tpu_custom_call.1} parent=1 // pred_fallthru
      _
    // Predicated region
    $region30: #{tpu_custom_call.1} parent=1 // pred_check
      _
    $region31: #{tpu_custom_call.1} parent=1 // pred_check_branch
      %336 = sbr.rel (0) target = $region33
    $region32: #{tpu_custom_call.1} parent=1 // pred_region
      %338 = dma.done [#allocation4], 32
    $region33: #{tpu_custom_call.1} parent=1 // pred_fallthru
      _
    %339 = vsyncpa [#allocation3], 1
    %340 = vsyncpa [#allocation6], 1
    %341 = vsyncpa [#allocation4], 1

</llo_original>
